<compile_context>
chip_gen: v6e
topology: v6e:2x2x1
jax: 0.10.0
libtpu: 0.0.40
codegen_flags: <defaults>
</compile_context>

<pallas_src>
import functools

import jax
import jax.numpy as jnp
from jax.experimental import pallas as pl
from jax.experimental.pallas import tpu as pltpu


def dqn_kernel(x_ref, w1_ref, b1_ref, w2_ref, b2_ref, w3_ref, b3_ref, o_ref):
    # Fused 3x (matmul + bias [+ ReLU]); f32 accumulation on the MXU, ReLU on VPU.
    x = x_ref[...]
    h1 = jnp.dot(x, w1_ref[...], preferred_element_type=jnp.float32) + b1_ref[...]
    h1 = jnp.maximum(h1, 0.0)
    h2 = jnp.dot(h1, w2_ref[...], preferred_element_type=jnp.float32) + b2_ref[...]
    h2 = jnp.maximum(h2, 0.0)
    out = jnp.dot(h2, w3_ref[...], preferred_element_type=jnp.float32) + b3_ref[...]
    o_ref[...] = out.astype(o_ref.dtype)


def _round_up(x, m):
    return ((x + m - 1) // m) * m


def dqn_forward(state, params, *, max_block_b=512):
    """state: (B, state_size) float32. params: dict of w1,b1,w2,b2,w3,b3 (in, out) layout."""
    w1, b1 = params["w1"], params["b1"]
    w2, b2 = params["w2"], params["b2"]
    w3, b3 = params["w3"], params["b3"]
    B, S = state.shape
    H1 = w1.shape[1]
    H2 = w2.shape[1]
    A = w3.shape[1]

    # Lane-dense output: pad the final projection's out-dim to a multiple of 128
    # so the output store is unmasked full-lane vst; slice back after the call.
    A_pad = _round_up(A, 128)
    if A_pad != A:
        w3p = jnp.pad(w3, ((0, 0), (0, A_pad - A)))
        b3p = jnp.pad(b3, ((0, 0), (0, A_pad - A)))
    else:
        w3p, b3p = w3, b3

    # Large rows-per-step block; pad batch to a multiple of it (rows of zeros are
    # discarded by the final slice, so bias/ReLU garbage in padded rows is harmless).
    block_b = min(max_block_b, _round_up(B, 8))
    B_pad = _round_up(B, block_b)
    if B_pad != B:
        state_p = jnp.pad(state, ((0, B_pad - B), (0, 0)))
    else:
        state_p = state

    grid = (B_pad // block_b,)

    flops = 2 * B_pad * (S * H1 + H1 * H2 + H2 * A_pad)
    bytes_accessed = 4 * (
        B_pad * S + B_pad * A_pad
        + S * H1 + H1 + H1 * H2 + H2 + H2 * A_pad + A_pad
    )

    out_padded = pl.pallas_call(
        dqn_kernel,
        out_shape=jax.ShapeDtypeStruct((B_pad, A_pad), state.dtype),
        grid_spec=pltpu.PrefetchScalarGridSpec(
            num_scalar_prefetch=0,
            grid=grid,
            in_specs=[
                pl.BlockSpec((block_b, S), lambda i: (i, 0)),   # state tile
                pl.BlockSpec((S, H1), lambda i: (0, 0)),        # w1 (resident)
                pl.BlockSpec((1, H1), lambda i: (0, 0)),        # b1
                pl.BlockSpec((H1, H2), lambda i: (0, 0)),       # w2
                pl.BlockSpec((1, H2), lambda i: (0, 0)),        # b2
                pl.BlockSpec((H2, A_pad), lambda i: (0, 0)),    # w3 (lane-padded)
                pl.BlockSpec((1, A_pad), lambda i: (0, 0)),     # b3 (lane-padded)
            ],
            out_specs=pl.BlockSpec((block_b, A_pad), lambda i: (i, 0)),
        ),
        compiler_params=pltpu.CompilerParams(
            dimension_semantics=("parallel",),
        ),
        cost_estimate=pl.CostEstimate(
            flops=flops, transcendentals=0, bytes_accessed=bytes_accessed
        ),
    )(state_p, w1, b1, w2, b2, w3p, b3p)

    return out_padded[:B, :A]


def init_dqn_params(key, state_size, hidden_1_dims, hidden_2_dims, n_actions):
    """Deterministic init mimicking PyTorch nn.Linear default (uniform +/- 1/sqrt(fan_in))."""
    def linear(k, fan_in, fan_out):
        kw, kb = jax.random.split(k)
        bound = 1.0 / jnp.sqrt(fan_in)
        # stored as (in, out) so the kernel computes x @ W
        w = jax.random.uniform(kw, (fan_in, fan_out), jnp.float32, -bound, bound)
        b = jax.random.uniform(kb, (1, fan_out), jnp.float32, -bound, bound)
        return w, b

    k1, k2, k3 = jax.random.split(key, 3)
    w1, b1 = linear(k1, state_size, hidden_1_dims)
    w2, b2 = linear(k2, hidden_1_dims, hidden_2_dims)
    w3, b3 = linear(k3, hidden_2_dims, n_actions)
    return {"w1": w1, "b1": b1, "w2": w2, "b2": b2, "w3": w3, "b3": b3}


if __name__ == "__main__":
    # Small shapes consistent with the module's forward; batch deliberately not a
    # multiple of 8 to exercise the padding path.
    batch = 10
    state_size = 16
    hidden_1_dims = 32
    hidden_2_dims = 32
    n_actions = 4

    key = jax.random.PRNGKey(0)
    k_params, k_state = jax.random.split(key)
    params = init_dqn_params(k_params, state_size, hidden_1_dims, hidden_2_dims, n_actions)
    state = jax.random.normal(k_state, (batch, state_size), jnp.float32)

    fwd = jax.jit(functools.partial(dqn_forward, max_block_b=512))
    actions = fwd(state, params)
    jax.block_until_ready(actions)

    # Pure-JAX reference check of the same forward pass.
    def ref(x, p):
        h1 = jnp.maximum(x @ p["w1"] + p["b1"], 0.0)
        h2 = jnp.maximum(h1 @ p["w2"] + p["b2"], 0.0)
        return h2 @ p["w3"] + p["b3"]

    expected = ref(state, params)
    assert actions.shape == (batch, n_actions)
    assert jnp.allclose(actions, expected, atol=1e-5, rtol=1e-5)

    # TODO(synk): HuberLoss / Adam from __init__ are training-time constructs and
    # are intentionally not part of this forward-pass kernel.
    print("KERNEL_OK")
</pallas_src>

<mosaic_0001>
module attributes {stable_mosaic.version = 11 : i64} {
  func.func @dqn_kernel(%arg0: i32, %arg1: memref<16x16xf32, #tpu.memory_space<vmem>>, %arg2: memref<16x32xf32, #tpu.memory_space<vmem>>, %arg3: memref<1x32xf32, #tpu.memory_space<vmem>>, %arg4: memref<32x32xf32, #tpu.memory_space<vmem>>, %arg5: memref<1x32xf32, #tpu.memory_space<vmem>>, %arg6: memref<32x128xf32, #tpu.memory_space<vmem>>, %arg7: memref<1x128xf32, #tpu.memory_space<vmem>>, %arg8: memref<16x128xf32, #tpu.memory_space<vmem>>) attributes {dimension_semantics = [#tpu.dimension_semantics<parallel>], iteration_bounds = array<i64: 1>, scalar_prefetch = 0 : i64, scratch_operands = 0 : i64, tpu.core_type = #tpu.core_type<tc>, window_params = [{transform_indices = @transform_0, window_bounds = array<i64: 16, 16>}, {pipeline_mode = #tpu.pipeline_mode<synchronous>, transform_indices = @transform_1, window_bounds = array<i64: 16, 32>}, {pipeline_mode = #tpu.pipeline_mode<synchronous>, transform_indices = @transform_2, window_bounds = array<i64: 1, 32>}, {pipeline_mode = #tpu.pipeline_mode<synchronous>, transform_indices = @transform_3, window_bounds = array<i64: 32, 32>}, {pipeline_mode = #tpu.pipeline_mode<synchronous>, transform_indices = @transform_4, window_bounds = array<i64: 1, 32>}, {pipeline_mode = #tpu.pipeline_mode<synchronous>, transform_indices = @transform_5, window_bounds = array<i64: 32, 128>}, {pipeline_mode = #tpu.pipeline_mode<synchronous>, transform_indices = @transform_6, window_bounds = array<i64: 1, 128>}, {transform_indices = @transform_7, window_bounds = array<i64: 16, 128>}]} {
    %c0 = arith.constant 0 : index
    %c0_0 = arith.constant 0 : index
    %0 = vector.load %arg1[%c0, %c0_0] : memref<16x16xf32, #tpu.memory_space<vmem>>, vector<16x16xf32>
    %c0_1 = arith.constant 0 : index
    %c0_2 = arith.constant 0 : index
    %1 = vector.load %arg2[%c0_1, %c0_2] : memref<16x32xf32, #tpu.memory_space<vmem>>, vector<16x32xf32>
    %cst = arith.constant dense<0.000000e+00> : vector<16x32xf32>
    %2 = tpu.matmul %0, %1, %cst {dimension_numbers = #tpu.dot_dimension_numbers<[1], [0], [0], [1], [0, 0, 1, 1], [], []>} : vector<16x16xf32>, vector<16x32xf32>, vector<16x32xf32> -> vector<16x32xf32>
    %c0_3 = arith.constant 0 : index
    %c0_4 = arith.constant 0 : index
    %3 = vector.load %arg3[%c0_3, %c0_4] : memref<1x32xf32, #tpu.memory_space<vmem>>, vector<1x32xf32>
    %4 = vector.broadcast %3 : vector<1x32xf32> to vector<16x32xf32>
    %5 = arith.addf %2, %4 : vector<16x32xf32>
    %cst_5 = arith.constant 0.000000e+00 : f32
    %6 = vector.broadcast %cst_5 : f32 to vector<16x32xf32>
    %7 = arith.maximumf %5, %6 : vector<16x32xf32>
    %c0_6 = arith.constant 0 : index
    %c0_7 = arith.constant 0 : index
    %8 = vector.load %arg4[%c0_6, %c0_7] : memref<32x32xf32, #tpu.memory_space<vmem>>, vector<32x32xf32>
    %cst_8 = arith.constant dense<0.000000e+00> : vector<16x32xf32>
    %9 = tpu.matmul %7, %8, %cst_8 {dimension_numbers = #tpu.dot_dimension_numbers<[1], [0], [0], [1], [0, 0, 1, 1], [], []>} : vector<16x32xf32>, vector<32x32xf32>, vector<16x32xf32> -> vector<16x32xf32>
    %c0_9 = arith.constant 0 : index
    %c0_10 = arith.constant 0 : index
    %10 = vector.load %arg5[%c0_9, %c0_10] : memref<1x32xf32, #tpu.memory_space<vmem>>, vector<1x32xf32>
    %11 = vector.broadcast %10 : vector<1x32xf32> to vector<16x32xf32>
    %12 = arith.addf %9, %11 : vector<16x32xf32>
    %cst_11 = arith.constant 0.000000e+00 : f32
    %13 = vector.broadcast %cst_11 : f32 to vector<16x32xf32>
    %14 = arith.maximumf %12, %13 : vector<16x32xf32>
    %c0_12 = arith.constant 0 : index
    %c0_13 = arith.constant 0 : index
    %15 = vector.load %arg6[%c0_12, %c0_13] : memref<32x128xf32, #tpu.memory_space<vmem>>, vector<32x128xf32>
    %cst_14 = arith.constant dense<0.000000e+00> : vector<16x128xf32>
    %16 = tpu.matmul %14, %15, %cst_14 {dimension_numbers = #tpu.dot_dimension_numbers<[1], [0], [0], [1], [0, 0, 1, 1], [], []>} : vector<16x32xf32>, vector<32x128xf32>, vector<16x128xf32> -> vector<16x128xf32>
    %c0_15 = arith.constant 0 : index
    %c0_16 = arith.constant 0 : index
    %17 = vector.load %arg7[%c0_15, %c0_16] : memref<1x128xf32, #tpu.memory_space<vmem>>, vector<1x128xf32>
    %18 = vector.broadcast %17 : vector<1x128xf32> to vector<16x128xf32>
    %19 = arith.addf %16, %18 : vector<16x128xf32>
    %c0_17 = arith.constant 0 : index
    %c0_18 = arith.constant 0 : index
    %20 = vector.load %arg8[%c0_17, %c0_18] : memref<16x128xf32, #tpu.memory_space<vmem>>, vector<16x128xf32>
    tpu.vector_store %arg8[%c0_17, %c0_18], %19 {strides = array<i32>} : memref<16x128xf32, #tpu.memory_space<vmem>>, vector<16x128xf32>,
    return
  }
  func.func @transform_0(%arg0: i32) -> (i32, i32) {
    %c0_i32 = arith.constant 0 : i32
    %c0_i32_0 = arith.constant 0 : i32
    return %arg0, %c0_i32 : i32, i32
  }
  func.func @transform_1(%arg0: i32) -> (i32, i32) {
    %c0_i32 = arith.constant 0 : i32
    %c0_i32_0 = arith.constant 0 : i32
    %c0_i32_1 = arith.constant 0 : i32
    return %c0_i32, %c0_i32_0 : i32, i32
  }
  func.func @transform_2(%arg0: i32) -> (i32, i32) {
    %c0_i32 = arith.constant 0 : i32
    %c0_i32_0 = arith.constant 0 : i32
    %c0_i32_1 = arith.constant 0 : i32
    return %c0_i32, %c0_i32_0 : i32, i32
  }
  func.func @transform_3(%arg0: i32) -> (i32, i32) {
    %c0_i32 = arith.constant 0 : i32
    %c0_i32_0 = arith.constant 0 : i32
    %c0_i32_1 = arith.constant 0 : i32
    return %c0_i32, %c0_i32_0 : i32, i32
  }
  func.func @transform_4(%arg0: i32) -> (i32, i32) {
    %c0_i32 = arith.constant 0 : i32
    %c0_i32_0 = arith.constant 0 : i32
    %c0_i32_1 = arith.constant 0 : i32
    return %c0_i32, %c0_i32_0 : i32, i32
  }
  func.func @transform_5(%arg0: i32) -> (i32, i32) {
    %c0_i32 = arith.constant 0 : i32
    %c0_i32_0 = arith.constant 0 : i32
    %c0_i32_1 = arith.constant 0 : i32
    return %c0_i32, %c0_i32_0 : i32, i32
  }
  func.func @transform_6(%arg0: i32) -> (i32, i32) {
    %c0_i32 = arith.constant 0 : i32
    %c0_i32_0 = arith.constant 0 : i32
    %c0_i32_1 = arith.constant 0 : i32
    return %c0_i32, %c0_i32_0 : i32, i32
  }
  func.func @transform_7(%arg0: i32) -> (i32, i32) {
    %c0_i32 = arith.constant 0 : i32
    %c0_i32_0 = arith.constant 0 : i32
    return %arg0, %c0_i32 : i32, i32
  }
}

</mosaic_0001>

<llo_original>
// kernel: dqn_forward.1
$region0: #{dqn_forward.1}
  #allocation0 [shape = 'u32[]', space=smem, size = 0x4, offset = 0x4, fixed_abs, tag = 'smem constant byte address 0x4 - core index']
  #allocation1 [shape = 'u32[144,128]{1,0:T(1,128)}', space=vmem, size = 0x12000, scoped, tag = 'internal scratch']
  %s0 = inlined_call_operand.vmem [shape: f32[16,16], index: 0, kind: input, shape index: {}]
  %s1 = inlined_call_operand.vmem [shape: f32[16,32], index: 1, kind: input, shape index: {}]
  %s2 = inlined_call_operand.vmem [shape: f32[1,32], index: 2, kind: input, shape index: {}]
  %s3 = inlined_call_operand.vmem [shape: f32[32,32], index: 3, kind: input, shape index: {}]
  %s4 = inlined_call_operand.vmem [shape: f32[1,32], index: 4, kind: input, shape index: {}]
  %s5 = inlined_call_operand.vmem [shape: f32[32,128], index: 5, kind: input, shape index: {}]
  %s6 = inlined_call_operand.vmem [shape: f32[1,128], index: 6, kind: input, shape index: {}]
  %s7 = inlined_call_operand.vmem [shape: f32[16,128], index: 7, kind: output, shape index: {}]
  %s8 = sld [smem:[#allocation0]]
  $region38: #{dqn_forward.1} parent=0
    _
  %s10 = ssub.s32 1, %s8
  %s11 = scalar_select 0, %s10, %s8
  // Predicated region
  $region2: #{dqn_forward.1} parent=0 // pred_check
    _
  $region3: #{dqn_forward.1} parent=0 // pred_check_branch
    %13 = sbr.rel (0) target = $region5
  $region4: #{dqn_forward.1} parent=0 // pred_region
    _
  $region5: #{dqn_forward.1} parent=0 // pred_fallthru
    _
  // Predicated region
  $region6: #{dqn_forward.1} parent=0 // pred_check
    _
  $region7: #{dqn_forward.1} parent=0 // pred_check_branch
    %15 = sbr.rel (0) target = $region9
  $region8: #{dqn_forward.1} parent=0 // pred_region
    _
  $region9: #{dqn_forward.1} parent=0 // pred_fallthru
    _
  // Predicated region
  $region10: #{dqn_forward.1} parent=0 // pred_check
    _
  $region11: #{dqn_forward.1} parent=0 // pred_check_branch
    %17 = sbr.rel (0) target = $region13
  $region12: #{dqn_forward.1} parent=0 // pred_region
    _
  $region13: #{dqn_forward.1} parent=0 // pred_fallthru
    _
  // Predicated region
  $region14: #{dqn_forward.1} parent=0 // pred_check
    _
  $region15: #{dqn_forward.1} parent=0 // pred_check_branch
    %19 = sbr.rel (0) target = $region17
  $region16: #{dqn_forward.1} parent=0 // pred_region
    _
  $region17: #{dqn_forward.1} parent=0 // pred_fallthru
    _
  // Predicated region
  $region18: #{dqn_forward.1} parent=0 // pred_check
    _
  $region19: #{dqn_forward.1} parent=0 // pred_check_branch
    %21 = sbr.rel (0) target = $region21
  $region20: #{dqn_forward.1} parent=0 // pred_region
    _
  $region21: #{dqn_forward.1} parent=0 // pred_fallthru
    _
  // Predicated region
  $region22: #{dqn_forward.1} parent=0 // pred_check
    _
  $region23: #{dqn_forward.1} parent=0 // pred_check_branch
    %23 = sbr.rel (0) target = $region25
  $region24: #{dqn_forward.1} parent=0 // pred_region
    _
  $region25: #{dqn_forward.1} parent=0 // pred_fallthru
    _
  // Predicated region
  $region26: #{dqn_forward.1} parent=0 // pred_check
    _
  $region27: #{dqn_forward.1} parent=0 // pred_check_branch
    %25 = sbr.rel (0) target = $region29
  $region28: #{dqn_forward.1} parent=0 // pred_region
    _
  $region29: #{dqn_forward.1} parent=0 // pred_fallthru
    _
  %v26 = vld [vmem:[%s0] sm:$0xff]
  %v27 = vld [vmem:[%s0 + $0x8] sm:$0xff]
  %v28 = vld [vmem:[%s1] sm:$0xff]
  %v29 = vld [vmem:[%s1 + $0x8] sm:$0xff]
  %v30 = vld [vmem:[%s2] sm:$0x1]
  %v32 = vlaneseq
  %v33 = vshrl.u32 %v32, 7
  %v34 = vsub.s32 0, %v33
  %v35 = vrot.slane %v30, %v34
  %vm37 = vcmask 130048
  %v39 = vsel %vm37, %v26, 0
  %v42 = vsel %vm37, %v27, 0
  %44 = vmatprep.subr.mxu0 0.0
  %45 = vmatpush1.msra.mxu0 0.0
  %46 = vmatprep.subr.mxu0 0.0
  %47 = vmatpush1.msra.mxu0 0.0
  %48 = vmatprep.subr.mxu0 0.0
  %49 = vmatpush1.msra.mxu0 0.0
  %50 = vmatprep.subr.mxu0 0.0
  %51 = vmatpush1.msra.mxu0 0.0
  %52 = vmatprep.subr.mxu0 0.0
  %53 = vmatpush1.msra.mxu0 0.0
  %54 = vmatprep.subr.mxu0 0.0
  %55 = vmatpush1.msra.mxu0 0.0
  %56 = vmatprep.subr.mxu0 0.0
  %57 = vmatpush1.msra.mxu0 0.0
  %58 = vmatprep.subr.mxu0 0.0
  %59 = vmatpush1.msra.mxu0 0.0
  %60 = vmatprep.subr.mxu0 0.0
  %61 = vmatpush1.msra.mxu0 0.0
  %62 = vmatprep.subr.mxu0 0.0
  %63 = vmatpush1.msra.mxu0 0.0
  %64 = vmatprep.subr.mxu0 0.0
  %65 = vmatpush1.msra.mxu0 0.0
  %66 = vmatprep.subr.mxu0 0.0
  %67 = vmatpush1.msra.mxu0 0.0
  %68 = vmatprep.subr.mxu0 0.0
  %69 = vmatpush1.msra.mxu0 0.0
  %70 = vmatprep.subr.mxu0 0.0
  %71 = vmatpush1.msra.mxu0 0.0
  %72 = vmatprep.subr.mxu0 0.0
  %73 = vmatpush1.msra.mxu0 %v29
  %74 = vmatprep.subr.mxu0 0.0
  %75 = vmatpush1.msra.mxu0 %v28
  %76 = vmatprep.subr.mxu0 0.0
  %77 = vmatpush2.msra.mxu0 0.0
  %78 = vmatprep.subr.mxu0 0.0
  %79 = vmatpush2.msra.mxu0 0.0
  %80 = vmatprep.subr.mxu0 0.0
  %81 = vmatpush2.msra.mxu0 0.0
  %82 = vmatprep.subr.mxu0 0.0
  %83 = vmatpush2.msra.mxu0 0.0
  %84 = vmatprep.subr.mxu0 0.0
  %85 = vmatpush2.msra.mxu0 0.0
  %86 = vmatprep.subr.mxu0 0.0
  %87 = vmatpush2.msra.mxu0 0.0
  %88 = vmatprep.subr.mxu0 0.0
  %89 = vmatpush2.msra.mxu0 0.0
  %90 = vmatprep.subr.mxu0 0.0
  %91 = vmatpush2.msra.mxu0 0.0
  %92 = vmatprep.subr.mxu0 0.0
  %93 = vmatpush2.msra.mxu0 0.0
  %94 = vmatprep.subr.mxu0 0.0
  %95 = vmatpush2.msra.mxu0 0.0
  %96 = vmatprep.subr.mxu0 0.0
  %97 = vmatpush2.msra.mxu0 0.0
  %98 = vmatprep.subr.mxu0 0.0
  %99 = vmatpush2.msra.mxu0 0.0
  %100 = vmatprep.subr.mxu0 0.0
  %101 = vmatpush2.msra.mxu0 0.0
  %102 = vmatprep.subr.mxu0 0.0
  %103 = vmatpush2.msra.mxu0 0.0
  %104 = vmatprep.subr.mxu0 0.0
  %105 = vmatpush2.msra.mxu0 0.0
  %106 = vmatprep.subr.mxu0 0.0
  %107 = vmatpush2.msra.mxu0 0.0
  %108 = vmatprep.mubr.f32.mxu0 0.0
  %109 = vmatmul.mubr.f32.gmra.mxu0 %v39
  %v110 = vpop.f32.mrf.mxu0
  %v111 = vadd.f32 %v35, %v110
  %v112 = vpop.f32.mrf.mxu0
  %113 = vmatprep.mubr.f32.mxu0 0.0
  %114 = vmatmul.mubr.f32.gmra.mxu0 %v42
  %v115 = vpop.f32.mrf.mxu0
  %v116 = vadd.f32 %v35, %v115
  %v117 = vpop.f32.mrf.mxu0
  %118 = vdwg.mxu0
  %v119 = vmax.f32 %v111, 0.0
  %v120 = vmax.f32 %v116, 0.0
  %v121 = vld [vmem:[%s3] sm:$0xff]
  %v122 = vld [vmem:[%s3 + $0x8] sm:$0xff]
  %v123 = vld [vmem:[%s3 + $0x10] sm:$0xff]
  %v124 = vld [vmem:[%s3 + $0x18] sm:$0xff]
  %v125 = vld [vmem:[%s4] sm:$0x1]
  %v127 = vlaneseq
  %v128 = vshrl.u32 %v127, 7
  %v129 = vsub.s32 0, %v128
  %v130 = vrot.slane %v125, %v129
  %vm132 = vcmask 261120
  %v134 = vsel %vm132, %v119, 0
  %v137 = vsel %vm132, %v120, 0
  %139 = vmatprep.subr.mxu0 0.0
  %140 = vmatpush1.msra.mxu0 0.0
  %141 = vmatprep.subr.mxu0 0.0
  %142 = vmatpush1.msra.mxu0 0.0
  %143 = vmatprep.subr.mxu0 0.0
  %144 = vmatpush1.msra.mxu0 0.0
  %145 = vmatprep.subr.mxu0 0.0
  %146 = vmatpush1.msra.mxu0 0.0
  %147 = vmatprep.subr.mxu0 0.0
  %148 = vmatpush1.msra.mxu0 0.0
  %149 = vmatprep.subr.mxu0 0.0
  %150 = vmatpush1.msra.mxu0 0.0
  %151 = vmatprep.subr.mxu0 0.0
  %152 = vmatpush1.msra.mxu0 0.0
  %153 = vmatprep.subr.mxu0 0.0
  %154 = vmatpush1.msra.mxu0 0.0
  %155 = vmatprep.subr.mxu0 0.0
  %156 = vmatpush1.msra.mxu0 0.0
  %157 = vmatprep.subr.mxu0 0.0
  %158 = vmatpush1.msra.mxu0 0.0
  %159 = vmatprep.subr.mxu0 0.0
  %160 = vmatpush1.msra.mxu0 0.0
  %161 = vmatprep.subr.mxu0 0.0
  %162 = vmatpush1.msra.mxu0 0.0
  %163 = vmatprep.subr.mxu0 0.0
  %164 = vmatpush1.msra.mxu0 %v124
  %165 = vmatprep.subr.mxu0 0.0
  %166 = vmatpush1.msra.mxu0 %v123
  %167 = vmatprep.subr.mxu0 0.0
  %168 = vmatpush1.msra.mxu0 %v122
  %169 = vmatprep.subr.mxu0 0.0
  %170 = vmatpush1.msra.mxu0 %v121
  %171 = vmatprep.subr.mxu0 0.0
  %172 = vmatpush2.msra.mxu0 0.0
  %173 = vmatprep.subr.mxu0 0.0
  %174 = vmatpush2.msra.mxu0 0.0
  %175 = vmatprep.subr.mxu0 0.0
  %176 = vmatpush2.msra.mxu0 0.0
  %177 = vmatprep.subr.mxu0 0.0
  %178 = vmatpush2.msra.mxu0 0.0
  %179 = vmatprep.subr.mxu0 0.0
  %180 = vmatpush2.msra.mxu0 0.0
  %181 = vmatprep.subr.mxu0 0.0
  %182 = vmatpush2.msra.mxu0 0.0
  %183 = vmatprep.subr.mxu0 0.0
  %184 = vmatpush2.msra.mxu0 0.0
  %185 = vmatprep.subr.mxu0 0.0
  %186 = vmatpush2.msra.mxu0 0.0
  %187 = vmatprep.subr.mxu0 0.0
  %188 = vmatpush2.msra.mxu0 0.0
  %189 = vmatprep.subr.mxu0 0.0
  %190 = vmatpush2.msra.mxu0 0.0
  %191 = vmatprep.subr.mxu0 0.0
  %192 = vmatpush2.msra.mxu0 0.0
  %193 = vmatprep.subr.mxu0 0.0
  %194 = vmatpush2.msra.mxu0 0.0
  %195 = vmatprep.subr.mxu0 0.0
  %196 = vmatpush2.msra.mxu0 0.0
  %197 = vmatprep.subr.mxu0 0.0
  %198 = vmatpush2.msra.mxu0 0.0
  %199 = vmatprep.subr.mxu0 0.0
  %200 = vmatpush2.msra.mxu0 0.0
  %201 = vmatprep.subr.mxu0 0.0
  %202 = vmatpush2.msra.mxu0 0.0
  %203 = vmatprep.mubr.f32.mxu0 0.0
  %204 = vmatmul.mubr.f32.gmra.mxu0 %v134
  %v205 = vpop.f32.mrf.mxu0
  %v206 = vadd.f32 %v130, %v205
  %v207 = vpop.f32.mrf.mxu0
  %208 = vmatprep.mubr.f32.mxu0 0.0
  %209 = vmatmul.mubr.f32.gmra.mxu0 %v137
  %v210 = vpop.f32.mrf.mxu0
  %v211 = vadd.f32 %v130, %v210
  %v212 = vpop.f32.mrf.mxu0
  %213 = vdwg.mxu0
  %v214 = vmax.f32 %v206, 0.0
  %v215 = vmax.f32 %v211, 0.0
  %v216 = vld [vmem:[%s5] sm:$0xff]
  %v217 = vld [vmem:[%s5 + $0x8] sm:$0xff]
  %v218 = vld [vmem:[%s5 + $0x10] sm:$0xff]
  %v219 = vld [vmem:[%s5 + $0x18] sm:$0xff]
  %v220 = vld [vmem:[%s6] sm:$0x1]
  %v222 = vlaneseq
  %v223 = vshrl.u32 %v222, 7
  %v224 = vsub.s32 0, %v223
  %v225 = vrot.slane %v220, %v224
  %v228 = vsel %vm132, %v214, 0
  %v231 = vsel %vm132, %v215, 0
  %233 = vmatprep.subr.mxu0 0.0
  %234 = vmatpush1.msra.mxu0 0.0
  %235 = vmatprep.subr.mxu0 0.0
  %236 = vmatpush1.msra.mxu0 0.0
  %237 = vmatprep.subr.mxu0 0.0
  %238 = vmatpush1.msra.mxu0 0.0
  %239 = vmatprep.subr.mxu0 0.0
  %240 = vmatpush1.msra.mxu0 0.0
  %241 = vmatprep.subr.mxu0 0.0
  %242 = vmatpush1.msra.mxu0 0.0
  %243 = vmatprep.subr.mxu0 0.0
  %244 = vmatpush1.msra.mxu0 0.0
  %245 = vmatprep.subr.mxu0 0.0
  %246 = vmatpush1.msra.mxu0 0.0
  %247 = vmatprep.subr.mxu0 0.0
  %248 = vmatpush1.msra.mxu0 0.0
  %249 = vmatprep.subr.mxu0 0.0
  %250 = vmatpush1.msra.mxu0 0.0
  %251 = vmatprep.subr.mxu0 0.0
  %252 = vmatpush1.msra.mxu0 0.0
  %253 = vmatprep.subr.mxu0 0.0
  %254 = vmatpush1.msra.mxu0 0.0
  %255 = vmatprep.subr.mxu0 0.0
  %256 = vmatpush1.msra.mxu0 0.0
  %257 = vmatprep.subr.mxu0 0.0
  %258 = vmatpush1.msra.mxu0 %v219
  %259 = vmatprep.subr.mxu0 0.0
  %260 = vmatpush1.msra.mxu0 %v218
  %261 = vmatprep.subr.mxu0 0.0
  %262 = vmatpush1.msra.mxu0 %v217
  %263 = vmatprep.subr.mxu0 0.0
  %264 = vmatpush1.msra.mxu0 %v216
  %265 = vmatprep.subr.mxu0 0.0
  %266 = vmatpush2.msra.mxu0 0.0
  %267 = vmatprep.subr.mxu0 0.0
  %268 = vmatpush2.msra.mxu0 0.0
  %269 = vmatprep.subr.mxu0 0.0
  %270 = vmatpush2.msra.mxu0 0.0
  %271 = vmatprep.subr.mxu0 0.0
  %272 = vmatpush2.msra.mxu0 0.0
  %273 = vmatprep.subr.mxu0 0.0
  %274 = vmatpush2.msra.mxu0 0.0
  %275 = vmatprep.subr.mxu0 0.0
  %276 = vmatpush2.msra.mxu0 0.0
  %277 = vmatprep.subr.mxu0 0.0
  %278 = vmatpush2.msra.mxu0 0.0
  %279 = vmatprep.subr.mxu0 0.0
  %280 = vmatpush2.msra.mxu0 0.0
  %281 = vmatprep.subr.mxu0 0.0
  %282 = vmatpush2.msra.mxu0 0.0
  %283 = vmatprep.subr.mxu0 0.0
  %284 = vmatpush2.msra.mxu0 0.0
  %285 = vmatprep.subr.mxu0 0.0
  %286 = vmatpush2.msra.mxu0 0.0
  %287 = vmatprep.subr.mxu0 0.0
  %288 = vmatpush2.msra.mxu0 0.0
  %289 = vmatprep.subr.mxu0 0.0
  %290 = vmatpush2.msra.mxu0 0.0
  %291 = vmatprep.subr.mxu0 0.0
  %292 = vmatpush2.msra.mxu0 0.0
  %293 = vmatprep.subr.mxu0 0.0
  %294 = vmatpush2.msra.mxu0 0.0
  %295 = vmatprep.subr.mxu0 0.0
  %296 = vmatpush2.msra.mxu0 0.0
  %297 = vmatprep.mubr.f32.mxu0 0.0
  %298 = vmatmul.mubr.f32.gmra.mxu0 %v228
  %v299 = vpop.f32.mrf.mxu0
  %v300 = vadd.f32 %v225, %v299
  %v301 = vpop.f32.mrf.mxu0
  %302 = vmatprep.mubr.f32.mxu0 0.0
  %303 = vmatmul.mubr.f32.gmra.mxu0 %v231
  %v304 = vpop.f32.mrf.mxu0
  %v305 = vadd.f32 %v225, %v304
  %v306 = vpop.f32.mrf.mxu0
  %307 = vdwg.mxu0
  %308 = vst [vmem:[%s7] sm:$0xff] %v300
  %309 = vst [vmem:[%s7 + $0x8] sm:$0xff] %v305
  // Predicated region
  $region30: #{dqn_forward.1} parent=0 // pred_check
    _
  $region31: #{dqn_forward.1} parent=0 // pred_check_branch
    %311 = sbr.rel (0) target = $region33
  $region32: #{dqn_forward.1} parent=0 // pred_region
    _
  $region33: #{dqn_forward.1} parent=0 // pred_fallthru
    _
  // Predicated region
  $region34: #{dqn_forward.1} parent=0 // pred_check
    _
  $region35: #{dqn_forward.1} parent=0 // pred_check_branch
    %313 = sbr.rel (0) target = $region37
  $region36: #{dqn_forward.1} parent=0 // pred_region
    _
  $region37: #{dqn_forward.1} parent=0 // pred_fallthru
    _

</llo_original>
